<compile_context>
chip_gen: v7x
topology: tpu7x:2x2x1
jax: 0.10.0
libtpu: 0.0.40
codegen_flags: <defaults>
</compile_context>

<pallas_src>
import jax
import jax.numpy as jnp
from jax.experimental import pallas as pl
from jax.experimental.pallas import tpu as pltpu


def _codebook_emb_kernel(x_ref, w_ref, m_ref, cb_ref, out_ref):
    R, H = out_ref.shape            # R = TB * NumField rows per tile
    NF = w_ref.shape[0]             # NumFeat

    idx = x_ref[...]                # (R, 1) int32 feature ids (pre-clamped)

    # One-hot over features -> MXU gather of weight and mask rows.  Exact:
    # exactly one 1.0 per row, everything else contributes exact zeros.
    feat_iota = jax.lax.broadcasted_iota(jnp.int32, (R, NF), 1)
    onehot = (feat_iota == idx).astype(w_ref.dtype)                    # (R, NF)
    w_rows = jnp.dot(onehot, w_ref[...],
                     preferred_element_type=jnp.float32)               # (R, H)
    m_rows = jnp.dot(onehot, m_ref[...],
                     preferred_element_type=jnp.float32)               # (R, H) in {0,1}

    # cb_ref is the codebook already tiled to this tile's row layout (R, H):
    # row r belongs to field (r % NumField).  Single vselect blend.
    w_sel = w_rows.astype(out_ref.dtype)
    out_ref[...] = jnp.where(m_rows > 0.5, cb_ref[...], w_sel)


def codebook_emb2_forward(x, weight, codebook_mask, codebook=None, *,
                          rows_per_tile=512):
    """Pallas equivalent of CodebookEmb2.forward.

    Args:
      x: (B, F) int feature indices
      weight: (NumFeat, H) float
      codebook_mask: (NumFeat, H) bool (1 == pruned)
      codebook: (F, H) float or None
    Returns:
      (B, F, H) array with weight's dtype
    """
    B, F = x.shape
    NF, H = weight.shape
    out_dtype = weight.dtype
    itemsize = jnp.dtype(out_dtype).itemsize

    if codebook is None:
        codebook = jnp.zeros((F, H), dtype=out_dtype)
    codebook = codebook.astype(out_dtype)

    # --- tile sizing: whole examples per tile, sublane-friendly, and keep the
    # (R x NF) one-hot intermediate modest (~2 MiB).
    cap_rows = max(8, (2 * 1024 * 1024) // max(1, NF * 4))
    tb = max(1, min(rows_per_tile, cap_rows) // F)       # batches per tile
    tb = max(8, (tb // 8) * 8)                           # R = tb*F multiple of 8
    if tb >= B:
        tb = B                                           # single tile (full dims)
    b_pad = pl.cdiv(B, tb) * tb
    grid = b_pad // tb
    R = tb * F

    # --- flatten / clamp indices (an OOB index would silently pick a wrong row)
    x_flat = jnp.clip(x.astype(jnp.int32), 0, NF - 1).reshape(B * F, 1)
    if b_pad != B:
        x_flat = jnp.pad(x_flat, ((0, (b_pad - B) * F), (0, 0)))

    # Mask as 0/1 in the weight dtype (exact), codebook pre-tiled to the tile's
    # flattened row layout: row r of a tile is field (r % F).
    mask_f = codebook_mask.astype(out_dtype)             # (NF, H)
    cb_tiled = jnp.tile(codebook, (tb, 1))               # (R, H)

    # --- VMEM budget: resident tables (x2 for buffering, conservative) +
    # pipelined blocks + one-hot / matmul temps.
    table_bytes = 2 * 2 * NF * H * itemsize              # weight + mask
    cb_bytes = 2 * R * H * itemsize
    blk_bytes = 2 * (R * 4 + R * H * itemsize)           # x + out blocks
    tmp_bytes = 3 * R * NF * 4 + 2 * R * H * 4           # iota/one-hot + accums
    vmem_need = table_bytes + cb_bytes + blk_bytes + tmp_bytes + (2 << 20)
    # cap at 64 MiB so the same setting is valid on v7x; v5e/v6e could go higher
    vmem_limit = int(min(64 * 2**20, max(16 * 2**20, vmem_need)))

    out_rows = b_pad * F
    cost = pl.CostEstimate(
        flops=2 * 2 * out_rows * H * NF,                 # two gather matmuls
        transcendentals=0,
        bytes_accessed=x_flat.size * 4
        + 2 * NF * H * itemsize                          # weight + mask (read once)
        + R * H * itemsize                               # tiled codebook
        + out_rows * H * itemsize,
    )

    grid_spec = pltpu.PrefetchScalarGridSpec(
        num_scalar_prefetch=0,
        grid=(grid,),
        in_specs=[
            pl.BlockSpec((R, 1), lambda i: (i, 0)),      # flattened x indices
            pl.BlockSpec((NF, H), lambda i: (0, 0)),     # weight, VMEM-resident
            pl.BlockSpec((NF, H), lambda i: (0, 0)),     # mask (0/1), resident
            pl.BlockSpec((R, H), lambda i: (0, 0)),      # tiled codebook, resident
        ],
        out_specs=pl.BlockSpec((R, H), lambda i: (i, 0)),
    )

    out_flat = pl.pallas_call(
        _codebook_emb_kernel,
        grid_spec=grid_spec,
        out_shape=jax.ShapeDtypeStruct((out_rows, H), out_dtype),
        compiler_params=pltpu.CompilerParams(
            dimension_semantics=("parallel",),
            vmem_limit_bytes=vmem_limit,
        ),
        cost_estimate=cost,
    )(x_flat, weight, mask_f, cb_tiled)

    return out_flat[: B * F].reshape(B, F, H)


if __name__ == "__main__":
    key = jax.random.PRNGKey(0)
    k_w, k_cb, k_m, k_x = jax.random.split(key, 4)

    # small synthetic config consistent with the module
    field_dims = [10, 20, 30, 40]            # NumField = 4
    num_feat = sum(field_dims)               # NumFeat = 100
    hidden = 128                             # HiddenSize (lane-aligned)
    batch = 10                               # exercises padding + 2 grid steps
    num_field = len(field_dims)

    weight = jax.random.normal(k_w, (num_feat, hidden), dtype=jnp.float32)
    codebook = jax.random.normal(k_cb, (num_field, hidden), dtype=jnp.float32)
    codebook_mask = jax.random.bernoulli(k_m, 0.5, (num_feat, hidden))   # bool

    # x: (Batch, NumField) global feature indices, one per field's range
    offsets = jnp.concatenate(
        [jnp.zeros((1,), jnp.int32),
         jnp.cumsum(jnp.array(field_dims, jnp.int32))[:-1]])
    per_field = jax.random.randint(
        k_x, (batch, num_field), 0, jnp.array(field_dims, jnp.int32)[None, :])
    x = (per_field + offsets[None, :]).astype(jnp.int32)

    out = codebook_emb2_forward(x, weight, codebook_mask, codebook,
                                rows_per_tile=32)   # small tile -> multi-step grid
    out = jax.block_until_ready(out)

    # pure-JAX reference of the PyTorch forward
    w1 = weight[x]                                   # (B, F, H)
    mask = codebook_mask[x]                          # (B, F, H) bool
    ref = jnp.where(mask, codebook[None, :, :], w1)

    assert out.shape == (batch, num_field, hidden)
    assert out.dtype == jnp.float32
    assert jnp.allclose(out, ref, atol=1e-5, rtol=1e-5), \
        float(jnp.max(jnp.abs(out - ref)))

    # also check the eval `codebook is None` branch
    out_none = jax.block_until_ready(
        codebook_emb2_forward(x, weight, codebook_mask, None, rows_per_tile=32))
    ref_none = jnp.where(mask, 0.0, w1)
    assert jnp.allclose(out_none, ref_none, atol=1e-5, rtol=1e-5)

    # single-tile (grid == 1) path
    out_big = jax.block_until_ready(
        codebook_emb2_forward(x, weight, codebook_mask, codebook))
    assert jnp.allclose(out_big, ref, atol=1e-5, rtol=1e-5)

    print("KERNEL_OK")
</pallas_src>

<mosaic_0001>
module attributes {stable_mosaic.version = 11 : i64} {
  func.func @_codebook_emb_kernel(%arg0: i32, %arg1: memref<32x1xi32, #tpu.memory_space<vmem>>, %arg2: memref<100x128xf32, #tpu.memory_space<vmem>>, %arg3: memref<100x128xf32, #tpu.memory_space<vmem>>, %arg4: memref<32x128xf32, #tpu.memory_space<vmem>>, %arg5: memref<32x128xf32, #tpu.memory_space<vmem>>) attributes {dimension_semantics = [#tpu.dimension_semantics<parallel>], iteration_bounds = array<i64: 2>, scalar_prefetch = 0 : i64, scratch_operands = 0 : i64, tpu.core_type = #tpu.core_type<tc>, window_params = [{transform_indices = @transform_0, window_bounds = array<i64: 32, 1>}, {pipeline_mode = #tpu.pipeline_mode<synchronous>, transform_indices = @transform_1, window_bounds = array<i64: 100, 128>}, {pipeline_mode = #tpu.pipeline_mode<synchronous>, transform_indices = @transform_2, window_bounds = array<i64: 100, 128>}, {pipeline_mode = #tpu.pipeline_mode<synchronous>, transform_indices = @transform_3, window_bounds = array<i64: 32, 128>}, {transform_indices = @transform_4, window_bounds = array<i64: 32, 128>}]} {
    %c0 = arith.constant 0 : index
    %c0_0 = arith.constant 0 : index
    %0 = vector.load %arg1[%c0, %c0_0] : memref<32x1xi32, #tpu.memory_space<vmem>>, vector<32x1xi32>
    %1 = tpu.iota {dimensions = array<i32: 1>} : vector<32x100xi32>
    %2 = vector.broadcast %0 : vector<32x1xi32> to vector<32x100xi32>
    %3 = arith.cmpi eq, %1, %2 : vector<32x100xi32>
    %4 = arith.extui %3 : vector<32x100xi1> to vector<32x100xi32>
    %5 = arith.sitofp %4 : vector<32x100xi32> to vector<32x100xf32>
    %c0_1 = arith.constant 0 : index
    %c0_2 = arith.constant 0 : index
    %6 = vector.load %arg2[%c0_1, %c0_2] : memref<100x128xf32, #tpu.memory_space<vmem>>, vector<100x128xf32>
    %cst = arith.constant dense<0.000000e+00> : vector<32x128xf32>
    %7 = tpu.matmul %5, %6, %cst {dimension_numbers = #tpu.dot_dimension_numbers<[1], [0], [0], [1], [0, 0, 1, 1], [], []>} : vector<32x100xf32>, vector<100x128xf32>, vector<32x128xf32> -> vector<32x128xf32>
    %c0_3 = arith.constant 0 : index
    %c0_4 = arith.constant 0 : index
    %8 = vector.load %arg3[%c0_3, %c0_4] : memref<100x128xf32, #tpu.memory_space<vmem>>, vector<100x128xf32>
    %cst_5 = arith.constant dense<0.000000e+00> : vector<32x128xf32>
    %9 = tpu.matmul %5, %8, %cst_5 {dimension_numbers = #tpu.dot_dimension_numbers<[1], [0], [0], [1], [0, 0, 1, 1], [], []>} : vector<32x100xf32>, vector<100x128xf32>, vector<32x128xf32> -> vector<32x128xf32>
    %cst_6 = arith.constant 5.000000e-01 : f32
    %10 = vector.broadcast %cst_6 : f32 to vector<32x128xf32>
    %11 = arith.cmpf ogt, %9, %10 : vector<32x128xf32>
    %c0_7 = arith.constant 0 : index
    %c0_8 = arith.constant 0 : index
    %12 = vector.load %arg4[%c0_7, %c0_8] : memref<32x128xf32, #tpu.memory_space<vmem>>, vector<32x128xf32>
    %13 = arith.select %11, %12, %7 : vector<32x128xi1>, vector<32x128xf32>
    %c0_9 = arith.constant 0 : index
    %c0_10 = arith.constant 0 : index
    %14 = vector.load %arg5[%c0_9, %c0_10] : memref<32x128xf32, #tpu.memory_space<vmem>>, vector<32x128xf32>
    tpu.vector_store %arg5[%c0_9, %c0_10], %13 {strides = array<i32>} : memref<32x128xf32, #tpu.memory_space<vmem>>, vector<32x128xf32>,
    return
  }
  func.func @transform_0(%arg0: i32) -> (i32, i32) {
    %c0_i32 = arith.constant 0 : i32
    %c0_i32_0 = arith.constant 0 : i32
    return %arg0, %c0_i32 : i32, i32
  }
  func.func @transform_1(%arg0: i32) -> (i32, i32) {
    %c0_i32 = arith.constant 0 : i32
    %c0_i32_0 = arith.constant 0 : i32
    %c0_i32_1 = arith.constant 0 : i32
    return %c0_i32, %c0_i32_0 : i32, i32
  }
  func.func @transform_2(%arg0: i32) -> (i32, i32) {
    %c0_i32 = arith.constant 0 : i32
    %c0_i32_0 = arith.constant 0 : i32
    %c0_i32_1 = arith.constant 0 : i32
    return %c0_i32, %c0_i32_0 : i32, i32
  }
  func.func @transform_3(%arg0: i32) -> (i32, i32) {
    %c0_i32 = arith.constant 0 : i32
    %c0_i32_0 = arith.constant 0 : i32
    %c0_i32_1 = arith.constant 0 : i32
    return %c0_i32, %c0_i32_0 : i32, i32
  }
  func.func @transform_4(%arg0: i32) -> (i32, i32) {
    %c0_i32 = arith.constant 0 : i32
    %c0_i32_0 = arith.constant 0 : i32
    return %arg0, %c0_i32 : i32, i32
  }
}

</mosaic_0001>

<llo_original>
// kernel: tpu_custom_call.1
$region0: #{tpu_custom_call.1}
  #allocation0 [shape = 'u32[]', space=smem, size = 0x4, offset = 0x4, fixed_abs, tag = 'smem constant byte address 0x4 - core index']
  #allocation1 [shape = 'u32[144,128]{1,0:T(1,128)}', space=vmem, size = 0x12000, scoped, tag = 'internal scratch']
  %s0 = inlined_call_operand.vmem [shape: s32[64,1], index: 0, kind: input, shape index: {}]
  %s1 = inlined_call_operand.hbm [shape: f32[100,128], index: 1, kind: input, shape index: {}]
  %s2 = inlined_call_operand.hbm [shape: f32[100,128], index: 2, kind: input, shape index: {}]
  %s3 = inlined_call_operand.vmem [shape: f32[32,128], index: 3, kind: input, shape index: {}]
  %s4 = inlined_call_operand.hbm [shape: f32[64,128], index: 4, kind: output, shape index: {}]
  %s5 = sld [smem:[#allocation0]]
  $region57: #{tpu_custom_call.1} parent=0
    _
  %s7 = ssub.s32 1, %s5
  %s8 = scalar_select 0, %s7, %s5
  $region1: #{tpu_custom_call.1} parent=0
    #allocation2 [shape = 'u8[53248]{0}', space=vmem, size = 0xd000, scoped, tag = 'input window, operand 1, single buffered']
    #allocation3 [shape = 's32[2]{0}', space=sflag, size = 0x8, scoped, tag = 'scoped memory for tpu_custom_call.1']
    #allocation4 [shape = 's32[2]{0}', space=sflag, size = 0x8, scoped, tag = 'scoped memory for tpu_custom_call.1']
    #allocation5 [shape = 'u8[53248]{0}', space=vmem, size = 0xd000, scoped, tag = 'input window, operand 2, single buffered']
    #allocation6 [shape = 's32[1]{0}', space=sflag, size = 0x4, scoped, tag = 'scoped memory for tpu_custom_call.1']
    #allocation7 [shape = 'u8[32768]{0}', space=vmem, size = 0x8000, scoped, tag = 'output window, operand 0']
    %9 = vsyncpa [#allocation3], 0
    %10 = vsyncpa [#allocation6], 0
    %11 = vsyncpa [#allocation4], 0
    %s12 = scalar_lea.sflag [#allocation4], 1
    %13 = vsyncpa %s12, 0
    loop: start=0, step=1, limit=4
    $region2: #{tpu_custom_call.1} parent=1 // loop_pre_header
      _
    $region3: #{tpu_custom_call.1} parent=1 // loop_header
      %s15 = sphi 0, %s19
      %p16 = scmp.ge.s32.totalorder %s15, 4
      %s25 = sphi 0, %s27
      %s28 = sphi 0, %s25
      %s29 = sphi 0, %s28
      %s45 = sphi 0, %s29
      %s49 = sphi 0, %s49
      %s51 = sphi 0, %s49
      %s52 = sphi 0, %s51
      %s66 = sphi 0, %s52
      %s70 = sphi 0, %s70
      %s72 = sphi 0, %s70
      %s73 = sphi 0, %s72
      %s87 = sphi 0, %s73
      %s91 = sphi 0, %s91
      %s93 = sphi 0, %s91
      %s94 = sphi 0, %s93
      %s108 = sphi 0, %s94
      %s114 = sphi 0, %s116
      %s117 = sphi 0, %s114
      %s118 = sphi 0, %s117
      %s134 = sphi 0, %s118
    $region4: #{tpu_custom_call.1} parent=1 // loop_header_branch
      %18 = sbr.rel (%p16) target = $region8
    $region5: #{tpu_custom_call.1} parent=1 // loop_body
      %s20 = ssub.s32 %s15, 1
      %s21 = ssub.s32 %s15, 2
      %s22 = sadd.s32 %s15, 1
      %s23 = ssub.s32 %s15, %s22
      %p24 = scmp.eq.s32.totalorder %s23, 0
      %s26 = sadd.s32 %s25, 1
      %s27 = scalar_select %p24, %s25, %s26
      %p30 = pneg %p24
      %p31 = scmp.eq.s32.totalorder %s15, 1
      %p32 = por %p30, %p31
      %p33 = scmp.ne.s32.totalorder %s25, %s28
      %p34 = scmp.eq.s32.totalorder %s15, 0
      %p35 = por %p33, %p34
      %p36 = scmp.ne.s32.totalorder %s25, %s28
      %p37 = scmp.eq.s32.totalorder %s20, 1
      %p38 = por %p36, %p37
      %p39 = scmp.ne.s32.totalorder %s28, %s29
      %p40 = scmp.eq.s32.totalorder %s20, 0
      %p41 = por %p39, %p40
      %p42 = scmp.ne.s32.totalorder %s28, %s29
      %p43 = scmp.eq.s32.totalorder %s21, 1
      %p44 = por %p42, %p43
      %p46 = scmp.ne.s32.totalorder %s29, %s45
      %p47 = scmp.eq.s32.totalorder %s21, 0
      %p48 = por %p46, %p47
      %s50 = sadd.s32 %s49, 1
      %p53 = scmp.eq.s32.totalorder %s15, 1
      %p54 = scmp.ne.s32.totalorder %s49, %s51
      %p55 = scmp.eq.s32.totalorder %s15, 0
      %p56 = por %p54, %p55
      %p57 = scmp.ne.s32.totalorder %s49, %s51
      %p58 = scmp.eq.s32.totalorder %s20, 1
      %p59 = por %p57, %p58
      %p60 = scmp.ne.s32.totalorder %s51, %s52
      %p61 = scmp.eq.s32.totalorder %s20, 0
      %p62 = por %p60, %p61
      %p63 = scmp.ne.s32.totalorder %s51, %s52
      %p64 = scmp.eq.s32.totalorder %s21, 1
      %p65 = por %p63, %p64
      %p67 = scmp.ne.s32.totalorder %s52, %s66
      %p68 = scmp.eq.s32.totalorder %s21, 0
      %p69 = por %p67, %p68
      %s71 = sadd.s32 %s70, 1
      %p74 = scmp.eq.s32.totalorder %s15, 1
      %p75 = scmp.ne.s32.totalorder %s70, %s72
      %p76 = scmp.eq.s32.totalorder %s15, 0
      %p77 = por %p75, %p76
      %p78 = scmp.ne.s32.totalorder %s70, %s72
      %p79 = scmp.eq.s32.totalorder %s20, 1
      %p80 = por %p78, %p79
      %p81 = scmp.ne.s32.totalorder %s72, %s73
      %p82 = scmp.eq.s32.totalorder %s20, 0
      %p83 = por %p81, %p82
      %p84 = scmp.ne.s32.totalorder %s72, %s73
      %p85 = scmp.eq.s32.totalorder %s21, 1
      %p86 = por %p84, %p85
      %p88 = scmp.ne.s32.totalorder %s73, %s87
      %p89 = scmp.eq.s32.totalorder %s21, 0
      %p90 = por %p88, %p89
      %s92 = sadd.s32 %s91, 1
      %p95 = scmp.eq.s32.totalorder %s15, 1
      %p96 = scmp.ne.s32.totalorder %s91, %s93
      %p97 = scmp.eq.s32.totalorder %s15, 0
      %p98 = por %p96, %p97
      %p99 = scmp.ne.s32.totalorder %s91, %s93
      %p100 = scmp.eq.s32.totalorder %s20, 1
      %p101 = por %p99, %p100
      %p102 = scmp.ne.s32.totalorder %s93, %s94
      %p103 = scmp.eq.s32.totalorder %s20, 0
      %p104 = por %p102, %p103
      %p105 = scmp.ne.s32.totalorder %s93, %s94
      %p106 = scmp.eq.s32.totalorder %s21, 1
      %p107 = por %p105, %p106
      %p109 = scmp.ne.s32.totalorder %s94, %s108
      %p110 = scmp.eq.s32.totalorder %s21, 0
      %p111 = por %p109, %p110
      %s112 = ssub.s32 %s15, %s22
      %p113 = scmp.eq.s32.totalorder %s112, 0
      %s115 = sadd.s32 %s114, 1
      %s116 = scalar_select %p113, %s114, %s115
      %p119 = pneg %p113
      %p120 = scmp.eq.s32.totalorder %s15, 1
      %p121 = por %p119, %p120
      %p122 = scmp.ne.s32.totalorder %s114, %s117
      %p123 = scmp.eq.s32.totalorder %s15, 0
      %p124 = por %p122, %p123
      %p125 = scmp.ne.s32.totalorder %s114, %s117
      %p126 = scmp.eq.s32.totalorder %s20, 1
      %p127 = por %p125, %p126
      %p128 = scmp.ne.s32.totalorder %s117, %s118
      %p129 = scmp.eq.s32.totalorder %s20, 0
      %p130 = por %p128, %p129
      %p131 = scmp.ne.s32.totalorder %s117, %s118
      %p132 = scmp.eq.s32.totalorder %s21, 1
      %p133 = por %p131, %p132
      %p135 = scmp.ne.s32.totalorder %s118, %s134
      %p136 = scmp.eq.s32.totalorder %s21, 0
      %p137 = por %p135, %p136
      %p138 = scmp.le.s32.totalorder 1, %s15
      %p139 = scmp.lt.s32.totalorder %s15, 3
      %p140 = pnand %p138, %p139
      %p141 = pneg %p140
      // Predicated region
      $region9: #{tpu_custom_call.1} parent=5 // pred_check
        _
      $region10: #{tpu_custom_call.1} parent=5 // pred_check_branch
        %143 = sbr.rel (%p140) target = $region12
      $region11: #{tpu_custom_call.1} parent=5 // pred_region
        %s144 = ssub.s32 %s15, 1
        // Predicated region
        $region13: #{tpu_custom_call.1} parent=11 // pred_check
          %p145 = pneg %p62
        $region14: #{tpu_custom_call.1} parent=11 // pred_check_branch
          %147 = sbr.rel (%p145) target = $region16
        $region15: #{tpu_custom_call.1} parent=11 // pred_region
          %s149 = ssub.s32 1664, 1664
          %150 = vsyncadd [#allocation3], %s149
          %s151 = sshll.u32 [#allocation2], 4
          %s152 = int_to_ptr.vmem [resolvable:$true] %s151
          %157 = dma.hbm_to_vmem [thread:$0]  %s1, 1664, %s152, [#allocation3], 128, 128, 8
        $region16: #{tpu_custom_call.1} parent=11 // pred_fallthru
          _
        // Predicated region
        $region17: #{tpu_custom_call.1} parent=11 // pred_check
          %p158 = pneg %p83
        $region18: #{tpu_custom_call.1} parent=11 // pred_check_branch
          %160 = sbr.rel (%p158) target = $region20
        $region19: #{tpu_custom_call.1} parent=11 // pred_region
          %s162 = ssub.s32 1664, 1664
          %163 = vsyncadd [#allocation6], %s162
          %s164 = sshll.u32 [#allocation5], 4
          %s165 = int_to_ptr.vmem [resolvable:$true] %s164
          %170 = dma.hbm_to_vmem [thread:$0]  %s2, 1664, %s165, [#allocation6], 128, 128, 8
        $region20: #{tpu_custom_call.1} parent=11 // pred_fallthru
          _
        // Predicated region
        $region21: #{tpu_custom_call.1} parent=11 // pred_check
          %p171 = pneg %p104
        $region22: #{tpu_custom_call.1} parent=11 // pred_check_branch
          %173 = sbr.rel (%p171) target = $region24
        $region23: #{tpu_custom_call.1} parent=11 // pred_region
          _
        $region24: #{tpu_custom_call.1} parent=11 // pred_fallthru
          _
      $region12: #{tpu_custom_call.1} parent=5 // pred_fallthru
        _
      %p174 = scmp.lt.s32.totalorder %s15, 2
      // Predicated region
      $region25: #{tpu_custom_call.1} parent=5 // pred_check
        %p175 = pneg %p174
      $region26: #{tpu_custom_call.1} parent=5 // pred_check_branch
        %177 = sbr.rel (%p175) target = $region28
      $region27: #{tpu_custom_call.1} parent=5 // pred_region
        // Predicated region
        $region29: #{tpu_custom_call.1} parent=27 // pred_check
          %p178 = pneg %p35
        $region30: #{tpu_custom_call.1} parent=27 // pred_check_branch
          %180 = sbr.rel (%p178) target = $region32
        $region31: #{tpu_custom_call.1} parent=27 // pred_region
          %s181 = smul.u32 4, %s15
          %p182 = scmp.lt.s32.totalorder %s181, 7
          %s183 = scalar_select %p182, %s181, 7
          %s184 = smul.addr %s183, 8
          %s185 = scalar_lea.vmem %s0, %s184
          %s186 = smul.u32 4, %s15
        $region32: #{tpu_custom_call.1} parent=27 // pred_fallthru
          _
      $region28: #{tpu_custom_call.1} parent=5 // pred_fallthru
        _
      %p187 = scmp.le.s32.totalorder 1, %s15
      %p188 = scmp.lt.s32.totalorder %s15, 3
      %p189 = pnand %p187, %p188
      %p190 = pneg %p189
      // Predicated region
      $region33: #{tpu_custom_call.1} parent=5 // pred_check
        _
      $region34: #{tpu_custom_call.1} parent=5 // pred_check_branch
        %192 = sbr.rel (%p189) target = $region36
      $region35: #{tpu_custom_call.1} parent=5 // pred_region
        %s193 = ssub.s32 %s15, 1
        // Predicated region
        $region37: #{tpu_custom_call.1} parent=35 // pred_check
          %p194 = pneg %p62
        $region38: #{tpu_custom_call.1} parent=35 // pred_check_branch
          %196 = sbr.rel (%p194) target = $region40
        $region39: #{tpu_custom_call.1} parent=35 // pred_region
          %197 = dma.done [#allocation3], 1664
        $region40: #{tpu_custom_call.1} parent=35 // pred_fallthru
          _
        // Predicated region
        $region41: #{tpu_custom_call.1} parent=35 // pred_check
          %p198 = pneg %p83
        $region42: #{tpu_custom_call.1} parent=35 // pred_check_branch
          %200 = sbr.rel (%p198) target = $region44
        $region43: #{tpu_custom_call.1} parent=35 // pred_region
          %201 = dma.done [#allocation6], 1664
        $region44: #{tpu_custom_call.1} parent=35 // pred_fallthru
          _
        %s202 = smul.u32 4, %s20
        %p203 = scmp.lt.s32.totalorder %s202, 7
        %s204 = scalar_select %p203, %s202, 7
        %s205 = smul.addr %s204, 8
        %s206 = scalar_lea.vmem %s0, %s205
        %p207 = pneg %p41
        %p208 = pneg %p38
        %p209 = pneg %p62
        %p210 = pneg %p59
        %p211 = pneg %p83
        %p212 = pneg %p80
        %p213 = pneg %p104
        %p214 = pneg %p101
        %p215 = pneg %p130
        %p216 = pneg %p127
        %s217 = sand.u32 %s117, 1
        %s218 = scalar_lea.sflag [#allocation4], %s217
        %s219 = sand.u32 %s117, 1
        %s220 = smul.addr %s219, 32
        %s221 = scalar_lea.vmem [#allocation7], %s220
        %s222 = smul.u32 4, %s20
        %p223 = scmp.lt.s32.totalorder %s222, 7
        %s224 = scalar_select %p223, %s222, 7
        %s225 = smul.addr %s224, 8
        %s226 = scalar_lea.vmem %s0, %s225
        %s227 = smul.u32 4, %s20
        %s228 = smul.u32 4, %s20
        %v229 = vld [vmem:[%s226] sm:$0xff]
        %v230 = vld [vmem:[%s226 + $0x8] sm:$0xff]
        %v231 = vld [vmem:[%s226 + $0x10] sm:$0xff]
        %v232 = vld [vmem:[%s226 + $0x18] sm:$0xff]
        %v233 = vlaneseq
        %v234 = vand.u32 %v233, 127
        %235 = vset.pattern.permute.xlu0 0
        %236 = vperm.xlu0 %235, %v229
        %v237 = vpop.permute.xlu0 %236
        %238 = vset.pattern.permute.xlu0 0
        %239 = vperm.xlu0 %238, %v230
        %v240 = vpop.permute.xlu0 %239
        %241 = vset.pattern.permute.xlu0 0
        %242 = vperm.xlu0 %241, %v231
        %v243 = vpop.permute.xlu0 %242
        %244 = vset.pattern.permute.xlu0 0
        %245 = vperm.xlu0 %244, %v232
        %v246 = vpop.permute.xlu0 %245
        %vm247 = vcmp.eq.s32.totalorder %v234, %v237
        %vm248 = vcmp.eq.s32.totalorder %v234, %v240
        %vm249 = vcmp.eq.s32.totalorder %v234, %v243
        %vm250 = vcmp.eq.s32.totalorder %v234, %v246
        %v251 = vsel %vm247, 1, 0
        %v252 = vsel %vm248, 1, 0
        %v253 = vsel %vm249, 1, 0
        %v254 = vsel %vm250, 1, 0
        %v255 = vcvt.s32.f32 %v251
        %v256 = vcvt.s32.f32 %v252
        %v257 = vcvt.s32.f32 %v253
        %v258 = vcvt.s32.f32 %v254
        %v259 = vld [vmem:[#allocation2] sm:$0xff]
        %v260 = vld [vmem:[#allocation2 + $0x8] sm:$0xff]
        %v261 = vld [vmem:[#allocation2 + $0x10] sm:$0xff]
        %v262 = vld [vmem:[#allocation2 + $0x18] sm:$0xff]
        %v263 = vld [vmem:[#allocation2 + $0x20] sm:$0xff]
        %v264 = vld [vmem:[#allocation2 + $0x28] sm:$0xff]
        %v265 = vld [vmem:[#allocation2 + $0x30] sm:$0xff]
        %v266 = vld [vmem:[#allocation2 + $0x38] sm:$0xff]
        %v267 = vld [vmem:[#allocation2 + $0x40] sm:$0xff]
        %v268 = vld [vmem:[#allocation2 + $0x48] sm:$0xff]
        %v269 = vld [vmem:[#allocation2 + $0x50] sm:$0xff]
        %v270 = vld [vmem:[#allocation2 + $0x58] sm:$0xff]
        %v271 = vld [vmem:[#allocation2 + $0x60] sm:$0xf]
        %vm272 = vcmask 818176
        %v274 = vsel %vm272, %v255, 0
        %v277 = vsel %vm272, %v256, 0
        %v280 = vsel %vm272, %v257, 0
        %v283 = vsel %vm272, %v258, 0
        %vm285 = vcmask 1043456
        %v287 = vsel %vm285, %v271, 0
        %289 = vmatprep.subr.mxu0 0.0
        %290 = vmatpush1.msra.mxu0 %v259
        %291 = vmatprep.subr.mxu0 0.0
        %292 = vmatpush1.msra.mxu0 %v260
        %293 = vmatprep.subr.mxu0 0.0
        %294 = vmatpush1.msra.mxu0 %v261
        %295 = vmatprep.subr.mxu0 0.0
        %296 = vmatpush1.msra.mxu0 %v262
        %297 = vmatprep.subr.mxu0 0.0
        %298 = vmatpush1.msra.mxu0 %v263
        %299 = vmatprep.subr.mxu0 0.0
        %300 = vmatpush1.msra.mxu0 %v264
        %301 = vmatprep.subr.mxu0 0.0
        %302 = vmatpush1.msra.mxu0 %v265
        %303 = vmatprep.subr.mxu0 0.0
        %304 = vmatpush1.msra.mxu0 %v266
        %305 = vmatprep.subr.mxu0 0.0
        %306 = vmatpush1.msra.mxu0 %v267
        %307 = vmatprep.subr.mxu0 0.0
        %308 = vmatpush1.msra.mxu0 %v268
        %309 = vmatprep.subr.mxu0 0.0
        %310 = vmatpush1.msra.mxu0 %v269
        %311 = vmatprep.subr.mxu0 0.0
        %312 = vmatpush1.msra.mxu0 %v270
        %313 = vmatprep.subr.mxu0 0.0
        %314 = vmatpush1.msra.mxu0 %v287
        %315 = vmatprep.subr.mxu0 0.0
        %316 = vmatpush1.msra.mxu0 0.0
        %317 = vmatprep.subr.mxu0 0.0
        %318 = vmatpush1.msra.mxu0 0.0
        %319 = vmatprep.subr.mxu0 0.0
        %320 = vmatpush1.msra.mxu0 0.0
        %321 = vmatprep.subr.mxu0 0.0
        %322 = vmatpush1.msra.mxu0 0.0
        %323 = vmatprep.subr.mxu0 0.0
        %324 = vmatpush1.msra.mxu0 0.0
        %325 = vmatprep.subr.mxu0 0.0
        %326 = vmatpush1.msra.mxu0 0.0
        %327 = vmatprep.subr.mxu0 0.0
        %328 = vmatpush1.msra.mxu0 0.0
        %329 = vmatprep.subr.mxu0 0.0
        %330 = vmatpush1.msra.mxu0 0.0
        %331 = vmatprep.subr.mxu0 0.0
        %332 = vmatpush1.msra.mxu0 0.0
        %333 = vmatprep.subr.mxu0 0.0
        %334 = vmatpush1.msra.mxu0 0.0
        %335 = vmatprep.subr.mxu0 0.0
        %336 = vmatpush1.msra.mxu0 0.0
        %337 = vmatprep.subr.mxu0 0.0
        %338 = vmatpush1.msra.mxu0 0.0
        %339 = vmatprep.subr.mxu0 0.0
        %340 = vmatpush1.msra.mxu0 0.0
        %341 = vmatprep.subr.mxu0 0.0
        %342 = vmatpush1.msra.mxu0 0.0
        %343 = vmatprep.subr.mxu0 0.0
        %344 = vmatpush1.msra.mxu0 0.0
        %345 = vmatprep.subr.mxu0 0.0
        %346 = vmatpush1.msra.mxu0 0.0
        %347 = vmatprep.subr.mxu0 0.0
        %348 = vmatpush1.msra.mxu0 0.0
        %349 = vmatprep.subr.mxu0 0.0
        %350 = vmatpush1.msra.mxu0 0.0
        %351 = vmatprep.subr.mxu0 0.0
        %352 = vmatpush1.msra.mxu0 0.0
        %353 = vmatprep.mubr.f32.mxu0 0.0
        %354 = vmatmul.mubr.f32.gmra.mrb[0].mxu0 %v274
        %v355 = vpop.f32.mrb[0].mxu0
        %v356 = vadd.f32 0.0, %v355
        %v357 = vpop.f32.mrb[0].mxu0
        %358 = vmatprep.mubr.f32.mxu0 0.0
        %359 = vmatmul.mubr.f32.gmra.mrb[0].mxu0 %v277
        %v360 = vpop.f32.mrb[0].mxu0
        %v361 = vadd.f32 0.0, %v360
        %v362 = vpop.f32.mrb[0].mxu0
        %363 = vmatprep.mubr.f32.mxu0 0.0
        %364 = vmatmul.mubr.f32.gmra.mrb[0].mxu0 %v280
        %v365 = vpop.f32.mrb[0].mxu0
        %v366 = vadd.f32 0.0, %v365
        %v367 = vpop.f32.mrb[0].mxu0
        %368 = vmatprep.mubr.f32.mxu0 0.0
        %369 = vmatmul.mubr.f32.gmra.mrb[0].mxu0 %v283
        %v370 = vpop.f32.mrb[0].mxu0
        %v371 = vadd.f32 0.0, %v370
        %v372 = vpop.f32.mrb[0].mxu0
        %373 = vdwg.mxu0
        %v374 = vld [vmem:[#allocation5] sm:$0xff]
        %v375 = vld [vmem:[#allocation5 + $0x8] sm:$0xff]
        %v376 = vld [vmem:[#allocation5 + $0x10] sm:$0xff]
        %v377 = vld [vmem:[#allocation5 + $0x18] sm:$0xff]
        %v378 = vld [vmem:[#allocation5 + $0x20] sm:$0xff]
        %v379 = vld [vmem:[#allocation5 + $0x28] sm:$0xff]
        %v380 = vld [vmem:[#allocation5 + $0x30] sm:$0xff]
        %v381 = vld [vmem:[#allocation5 + $0x38] sm:$0xff]
        %v382 = vld [vmem:[#allocation5 + $0x40] sm:$0xff]
        %v383 = vld [vmem:[#allocation5 + $0x48] sm:$0xff]
        %v384 = vld [vmem:[#allocation5 + $0x50] sm:$0xff]
        %v385 = vld [vmem:[#allocation5 + $0x58] sm:$0xff]
        %v386 = vld [vmem:[#allocation5 + $0x60] sm:$0xf]
        %v388 = vsel %vm285, %v386, 0
        %390 = vmatprep.subr.mxu0 0.0
        %391 = vmatpush1.msra.mxu0 %v374
        %392 = vmatprep.subr.mxu0 0.0
        %393 = vmatpush1.msra.mxu0 %v375
        %394 = vmatprep.subr.mxu0 0.0
        %395 = vmatpush1.msra.mxu0 %v376
        %396 = vmatprep.subr.mxu0 0.0
        %397 = vmatpush1.msra.mxu0 %v377
        %398 = vmatprep.subr.mxu0 0.0
        %399 = vmatpush1.msra.mxu0 %v378
        %400 = vmatprep.subr.mxu0 0.0
        %401 = vmatpush1.msra.mxu0 %v379
        %402 = vmatprep.subr.mxu0 0.0
        %403 = vmatpush1.msra.mxu0 %v380
        %404 = vmatprep.subr.mxu0 0.0
        %405 = vmatpush1.msra.mxu0 %v381
        %406 = vmatprep.subr.mxu0 0.0
        %407 = vmatpush1.msra.mxu0 %v382
        %408 = vmatprep.subr.mxu0 0.0
        %409 = vmatpush1.msra.mxu0 %v383
        %410 = vmatprep.subr.mxu0 0.0
        %411 = vmatpush1.msra.mxu0 %v384
        %412 = vmatprep.subr.mxu0 0.0
        %413 = vmatpush1.msra.mxu0 %v385
        %414 = vmatprep.subr.mxu0 0.0
        %415 = vmatpush1.msra.mxu0 %v388
        %416 = vmatprep.subr.mxu0 0.0
        %417 = vmatpush1.msra.mxu0 0.0
        %418 = vmatprep.subr.mxu0 0.0
        %419 = vmatpush1.msra.mxu0 0.0
        %420 = vmatprep.subr.mxu0 0.0
        %421 = vmatpush1.msra.mxu0 0.0
        %422 = vmatprep.subr.mxu0 0.0
        %423 = vmatpush1.msra.mxu0 0.0
        %424 = vmatprep.subr.mxu0 0.0
        %425 = vmatpush1.msra.mxu0 0.0
        %426 = vmatprep.subr.mxu0 0.0
        %427 = vmatpush1.msra.mxu0 0.0
        %428 = vmatprep.subr.mxu0 0.0
        %429 = vmatpush1.msra.mxu0 0.0
        %430 = vmatprep.subr.mxu0 0.0
        %431 = vmatpush1.msra.mxu0 0.0
        %432 = vmatprep.subr.mxu0 0.0
        %433 = vmatpush1.msra.mxu0 0.0
        %434 = vmatprep.subr.mxu0 0.0
        %435 = vmatpush1.msra.mxu0 0.0
        %436 = vmatprep.subr.mxu0 0.0
        %437 = vmatpush1.msra.mxu0 0.0
        %438 = vmatprep.subr.mxu0 0.0
        %439 = vmatpush1.msra.mxu0 0.0
        %440 = vmatprep.subr.mxu0 0.0
        %441 = vmatpush1.msra.mxu0 0.0
        %442 = vmatprep.subr.mxu0 0.0
        %443 = vmatpush1.msra.mxu0 0.0
        %444 = vmatprep.subr.mxu0 0.0
        %445 = vmatpush1.msra.mxu0 0.0
        %446 = vmatprep.subr.mxu0 0.0
        %447 = vmatpush1.msra.mxu0 0.0
        %448 = vmatprep.subr.mxu0 0.0
        %449 = vmatpush1.msra.mxu0 0.0
        %450 = vmatprep.subr.mxu0 0.0
        %451 = vmatpush1.msra.mxu0 0.0
        %452 = vmatprep.subr.mxu0 0.0
        %453 = vmatpush1.msra.mxu0 0.0
        %454 = vmatprep.mubr.f32.mxu0 0.0
        %455 = vmatmul.mubr.f32.gmra.mrb[0].mxu0 %v274
        %v456 = vpop.f32.mrb[0].mxu0
        %v457 = vadd.f32 0.0, %v456
        %v458 = vpop.f32.mrb[0].mxu0
        %459 = vmatprep.mubr.f32.mxu0 0.0
        %460 = vmatmul.mubr.f32.gmra.mrb[0].mxu0 %v277
        %v461 = vpop.f32.mrb[0].mxu0
        %v462 = vadd.f32 0.0, %v461
        %v463 = vpop.f32.mrb[0].mxu0
        %464 = vmatprep.mubr.f32.mxu0 0.0
        %465 = vmatmul.mubr.f32.gmra.mrb[0].mxu0 %v280
        %v466 = vpop.f32.mrb[0].mxu0
        %v467 = vadd.f32 0.0, %v466
        %v468 = vpop.f32.mrb[0].mxu0
        %469 = vmatprep.mubr.f32.mxu0 0.0
        %470 = vmatmul.mubr.f32.gmra.mrb[0].mxu0 %v283
        %v471 = vpop.f32.mrb[0].mxu0
        %v472 = vadd.f32 0.0, %v471
        %v473 = vpop.f32.mrb[0].mxu0
        %474 = vdwg.mxu0
        %vm475 = vcmp.gt.f32.partialorder %v457, 0.5
        %vm476 = vcmp.gt.f32.partialorder %v462, 0.5
        %vm477 = vcmp.gt.f32.partialorder %v467, 0.5
        %vm478 = vcmp.gt.f32.partialorder %v472, 0.5
        %v479 = vld [vmem:[%s3] sm:$0xff]
        %v480 = vld [vmem:[%s3 + $0x8] sm:$0xff]
        %v481 = vld [vmem:[%s3 + $0x10] sm:$0xff]
        %v482 = vld [vmem:[%s3 + $0x18] sm:$0xff]
        %v483 = vsel %vm475, %v479, %v356
        %v484 = vsel %vm476, %v480, %v361
        %v485 = vsel %vm477, %v481, %v366
        %v486 = vsel %vm478, %v482, %v371
        %487 = vst [vmem:[%s221] sm:$0xff] %v483
        %488 = vst [vmem:[%s221 + $0x8] sm:$0xff] %v484
        %489 = vst [vmem:[%s221 + $0x10] sm:$0xff] %v485
        %490 = vst [vmem:[%s221 + $0x18] sm:$0xff] %v486
        %s491 = sand.u32 %s117, 1
        %s492 = scalar_lea.sflag [#allocation4], %s491
        %s493 = sand.u32 %s117, 1
        %s494 = smul.addr %s493, 32
        %s495 = scalar_lea.vmem [#allocation7], %s494
        // Predicated region
        $region45: #{tpu_custom_call.1} parent=35 // pred_check
          %p496 = pneg %p127
        $region46: #{tpu_custom_call.1} parent=35 // pred_check_branch
          %498 = sbr.rel (%p496) target = $region48
        $region47: #{tpu_custom_call.1} parent=35 // pred_region
          %s499 = smul.u32 4, %s20
          %s501 = ssub.s32 512, 512
          %502 = vsyncadd %s492, %s501
          %s503 = smul.addr %s499, 128
          %s504 = scalar_lea.hbm %s4, %s503
          %s505 = sshll.u32 %s495, 4
          %s506 = int_to_ptr.vmem [resolvable:$true] %s505
          %511 = dma.vmem_to_hbm [thread:$0]  %s506, 512, %s504, %s492, 128, 128, 8
        $region48: #{tpu_custom_call.1} parent=35 // pred_fallthru
          _
      $region36: #{tpu_custom_call.1} parent=5 // pred_fallthru
        _
      %p512 = scmp.le.s32.totalorder 2, %s15
      // Predicated region
      $region49: #{tpu_custom_call.1} parent=5 // pred_check
        %p513 = pneg %p512
      $region50: #{tpu_custom_call.1} parent=5 // pred_check_branch
        %515 = sbr.rel (%p513) target = $region52
      $region51: #{tpu_custom_call.1} parent=5 // pred_region
        %s516 = ssub.s32 %s15, 2
        // Predicated region
        $region53: #{tpu_custom_call.1} parent=51 // pred_check
          %p517 = pneg %p133
        $region54: #{tpu_custom_call.1} parent=51 // pred_check_branch
          %519 = sbr.rel (%p517) target = $region56
        $region55: #{tpu_custom_call.1} parent=51 // pred_region
          %s520 = sand.u32 %s118, 1
          %s521 = scalar_lea.sflag [#allocation4], %s520
          %s522 = sand.u32 %s118, 1
          %s523 = smul.addr %s522, 32
          %s524 = scalar_lea.vmem [#allocation7], %s523
          %525 = dma.done %s521, 512
        $region56: #{tpu_custom_call.1} parent=51 // pred_fallthru
          _
      $region52: #{tpu_custom_call.1} parent=5 // pred_fallthru
        _
    $region6: #{tpu_custom_call.1} parent=1 // loop_footer
      %s19 = sadd.s32 1, %s15
    $region7: #{tpu_custom_call.1} parent=1 // loop_footer_branch
      %14 = sbr.rel target = $region3
    $region8: #{tpu_custom_call.1} parent=1 // loop_exit
      _
    %526 = vsyncpa [#allocation3], 1
    %s527 = scalar_lea.sflag [#allocation3], 1
    %528 = vsyncpa %s527, 1
    %529 = vsyncpa [#allocation6], 1
    %530 = vsyncpa [#allocation4], 1
    %s531 = scalar_lea.sflag [#allocation4], 1
    %532 = vsyncpa %s531, 1

</llo_original>
